<compile_context>
chip_gen: v5e
topology: v5e:2x2
jax: 0.10.0
libtpu: 0.0.40
codegen_flags: <defaults>
</compile_context>

<pallas_src>
import functools
import math

import numpy as np
import jax
import jax.numpy as jnp
from jax.experimental import pallas as pl
from jax.experimental.pallas import tpu as pltpu


# --------------------------------------------------------------------------
# Pallas kernel: fused (2x2 stride-2 conv as matmul) + bias + LeakyReLU
# --------------------------------------------------------------------------

def _patchdown_kernel(xt_ref, w_ref, b_ref, o_ref, *, slope):
    # xt_ref: (K = Cin*4, tile_p)   -- 2x2 patches, channel/tap-major rows
    # w_ref : (Cout, K)             -- conv weight flattened to match row order
    # b_ref : (Cout, 1)
    # o_ref : (Cout, tile_p)        -- lane-dense output (tile_p % 128 == 0)
    y = jnp.dot(w_ref[...], xt_ref[...], preferred_element_type=jnp.float32)
    y = y + b_ref[...]                        # broadcast over the lane axis
    o_ref[...] = jnp.where(y >= 0, y, y * slope).astype(o_ref.dtype)


def _pick_tile_p(P_pad, max_tile=2048):
    """Largest multiple-of-128 divisor of P_pad that is <= max_tile."""
    if P_pad <= max_tile:
        return P_pad
    t = (max_tile // 128) * 128
    while t >= 128:
        if P_pad % t == 0:
            return t
        t -= 128
    return P_pad


def patch_down(x_nchw, w_oihw, bias, *, slope=0.1):
    """PatchDown forward: leaky_relu(conv2d(x, w, b, k=2, s=2, p=0), slope)."""
    B, Cin, H, W = x_nchw.shape
    Cout = w_oihw.shape[0]
    OH, OW = H // 2, W // 2
    P = B * OH * OW
    K = Cin * 4

    # Space-to-depth + transpose: X^T[(ci*4 + ky*2 + kx), b*OH*OW + oh*OW + ow]
    #   = x[b, ci, 2*oh+ky, 2*ow+kx]
    xt = x_nchw.reshape(B, Cin, OH, 2, OW, 2)
    xt = xt.transpose(1, 3, 5, 0, 2, 4).reshape(K, P).astype(jnp.float32)

    # Pad the spatial/lane axis up to a multiple of 128 so every output store
    # is a full-lane (unmasked) vst.
    P_pad = ((P + 127) // 128) * 128
    if P_pad != P:
        xt = jnp.pad(xt, ((0, 0), (0, P_pad - P)))

    # Weight (Cout, Cin, 2, 2) -> (Cout, Cin*4), same row ordering as xt rows.
    wf = w_oihw.reshape(Cout, K).astype(jnp.float32)
    bf = bias.reshape(Cout, 1).astype(jnp.float32)

    tile_p = _pick_tile_p(P_pad)
    grid = (P_pad // tile_p,)

    y = pl.pallas_call(
        functools.partial(_patchdown_kernel, slope=slope),
        out_shape=jax.ShapeDtypeStruct((Cout, P_pad), jnp.float32),
        grid=grid,
        in_specs=[
            pl.BlockSpec((K, tile_p), lambda i: (0, i)),      # patches (streamed)
            pl.BlockSpec((Cout, K), lambda i: (0, 0)),        # weight  (resident)
            pl.BlockSpec((Cout, 1), lambda i: (0, 0)),        # bias    (resident)
        ],
        out_specs=pl.BlockSpec((Cout, tile_p), lambda i: (0, i)),
        compiler_params=pltpu.CompilerParams(
            dimension_semantics=("parallel",)),
    )(xt, wf, bf)

    # (Cout, P_pad) -> strip padding -> NCHW
    y = y[:, :P]
    return y.reshape(Cout, B, OH, OW).transpose(1, 0, 2, 3)


# --------------------------------------------------------------------------
# Main: build deterministic inputs, run, check vs pure-JAX reference
# --------------------------------------------------------------------------

if __name__ == "__main__":
    key = jax.random.PRNGKey(0)
    B, CIN, COUT, H, W = 2, 4, 8, 16, 16

    kx, kw, kb = jax.random.split(key, 3)
    x = jax.random.normal(kx, (B, CIN, H, W), jnp.float32)

    # kaiming_normal_(mode='fan_out', nonlinearity='relu'): std = sqrt(2 / (Cout*2*2))
    fan_out = COUT * 2 * 2
    w = jax.random.normal(kw, (COUT, CIN, 2, 2), jnp.float32) * math.sqrt(2.0 / fan_out)
    # Module inits bias to 0; use a small random bias here to exercise the fused add.
    b = 0.1 * jax.random.normal(kb, (COUT,), jnp.float32)

    out = jax.block_until_ready(patch_down(x, w, b, slope=0.1))
    assert out.shape == (B, COUT, H // 2, W // 2)

    # Pure-JAX reference of the same forward pass.
    ref = jax.lax.conv_general_dilated(
        x, w, window_strides=(2, 2), padding="VALID",
        dimension_numbers=("NCHW", "OIHW", "NCHW"))
    ref = ref + b.reshape(1, COUT, 1, 1)
    ref = jnp.where(ref >= 0, ref, 0.1 * ref)

    np.testing.assert_allclose(np.asarray(out), np.asarray(ref), rtol=1e-5, atol=1e-5)
    print("KERNEL_OK")
</pallas_src>

<mosaic_0001>
module attributes {stable_mosaic.version = 11 : i64} {
  func.func @_patchdown_kernel(%arg0: i32, %arg1: memref<16x128xf32, #tpu.memory_space<vmem>>, %arg2: memref<8x16xf32, #tpu.memory_space<vmem>>, %arg3: memref<8x1xf32, #tpu.memory_space<vmem>>, %arg4: memref<8x128xf32, #tpu.memory_space<vmem>>) attributes {dimension_semantics = [#tpu.dimension_semantics<parallel>], iteration_bounds = array<i64: 1>, scalar_prefetch = 0 : i64, scratch_operands = 0 : i64, tpu.core_type = #tpu.core_type<tc>, window_params = [{transform_indices = @transform_0, window_bounds = array<i64: 16, 128>}, {pipeline_mode = #tpu.pipeline_mode<synchronous>, transform_indices = @transform_1, window_bounds = array<i64: 8, 16>}, {pipeline_mode = #tpu.pipeline_mode<synchronous>, transform_indices = @transform_2, window_bounds = array<i64: 8, 1>}, {transform_indices = @transform_3, window_bounds = array<i64: 8, 128>}]} {
    %c0 = arith.constant 0 : index
    %c0_0 = arith.constant 0 : index
    %0 = vector.load %arg2[%c0, %c0_0] : memref<8x16xf32, #tpu.memory_space<vmem>>, vector<8x16xf32>
    %c0_1 = arith.constant 0 : index
    %c0_2 = arith.constant 0 : index
    %1 = vector.load %arg1[%c0_1, %c0_2] : memref<16x128xf32, #tpu.memory_space<vmem>>, vector<16x128xf32>
    %cst = arith.constant dense<0.000000e+00> : vector<8x128xf32>
    %2 = tpu.matmul %0, %1, %cst {dimension_numbers = #tpu.dot_dimension_numbers<[1], [0], [0], [1], [0, 0, 1, 1], [], []>} : vector<8x16xf32>, vector<16x128xf32>, vector<8x128xf32> -> vector<8x128xf32>
    %c0_3 = arith.constant 0 : index
    %c0_4 = arith.constant 0 : index
    %3 = vector.load %arg3[%c0_3, %c0_4] : memref<8x1xf32, #tpu.memory_space<vmem>>, vector<8x1xf32>
    %4 = vector.broadcast %3 : vector<8x1xf32> to vector<8x128xf32>
    %5 = arith.addf %2, %4 : vector<8x128xf32>
    %cst_5 = arith.constant 0.000000e+00 : f32
    %6 = vector.broadcast %cst_5 : f32 to vector<8x128xf32>
    %7 = arith.cmpf oge, %5, %6 : vector<8x128xf32>
    %cst_6 = arith.constant 1.000000e-01 : f32
    %8 = vector.broadcast %cst_6 : f32 to vector<8x128xf32>
    %9 = arith.mulf %5, %8 : vector<8x128xf32>
    %10 = arith.select %7, %5, %9 : vector<8x128xi1>, vector<8x128xf32>
    %c0_7 = arith.constant 0 : index
    %c0_8 = arith.constant 0 : index
    %11 = vector.load %arg4[%c0_7, %c0_8] : memref<8x128xf32, #tpu.memory_space<vmem>>, vector<8x128xf32>
    tpu.vector_store %arg4[%c0_7, %c0_8], %10 {strides = array<i32>} : memref<8x128xf32, #tpu.memory_space<vmem>>, vector<8x128xf32>,
    return
  }
  func.func @transform_0(%arg0: i32) -> (i32, i32) {
    %c0_i32 = arith.constant 0 : i32
    %c0_i32_0 = arith.constant 0 : i32
    return %c0_i32, %arg0 : i32, i32
  }
  func.func @transform_1(%arg0: i32) -> (i32, i32) {
    %c0_i32 = arith.constant 0 : i32
    %c0_i32_0 = arith.constant 0 : i32
    %c0_i32_1 = arith.constant 0 : i32
    return %c0_i32, %c0_i32_0 : i32, i32
  }
  func.func @transform_2(%arg0: i32) -> (i32, i32) {
    %c0_i32 = arith.constant 0 : i32
    %c0_i32_0 = arith.constant 0 : i32
    %c0_i32_1 = arith.constant 0 : i32
    return %c0_i32, %c0_i32_0 : i32, i32
  }
  func.func @transform_3(%arg0: i32) -> (i32, i32) {
    %c0_i32 = arith.constant 0 : i32
    %c0_i32_0 = arith.constant 0 : i32
    return %c0_i32, %arg0 : i32, i32
  }
}

</mosaic_0001>

<llo_original>
// kernel: tpu_custom_call.1
$region0: #{tpu_custom_call.1}
  #allocation0 [shape = 'u32[]', space=smem, size = 0x4, offset = 0x4, fixed_abs, tag = 'smem constant byte address 0x4 - core index']
  #allocation1 [shape = 'u32[72,128]{1,0:T(1,128)}', space=vmem, size = 0x9000, scoped, tag = 'internal scratch']
  %s0 = inlined_call_operand.hbm [shape: f32[16,128], index: 0, kind: input, shape index: {}]
  %s1 = inlined_call_operand.vmem [shape: f32[8,16], index: 1, kind: input, shape index: {}]
  %s2 = inlined_call_operand.vmem [shape: f32[8,1], index: 2, kind: input, shape index: {}]
  %s3 = inlined_call_operand.hbm [shape: f32[8,128], index: 3, kind: output, shape index: {}]
  %s4 = sld [smem:[#allocation0]]
  $region26: #{tpu_custom_call.1} parent=0
    _
  %s6 = ssub.s32 1, %s4
  %s7 = scalar_select 0, %s6, %s4
  $region1: #{tpu_custom_call.1} parent=0
    #allocation2 [shape = 'u8[8192]{0}', space=vmem, size = 0x2000, scoped, tag = 'input window, operand 0, single buffered']
    #allocation3 [shape = 's32[1]{0}', space=sflag, size = 0x4, scoped, tag = 'scoped memory for tpu_custom_call.1']
    #allocation4 [shape = 's32[1]{0}', space=sflag, size = 0x4, scoped, tag = 'scoped memory for tpu_custom_call.1']
    #allocation5 [shape = 'u8[4096]{0}', space=vmem, size = 0x1000, scoped, tag = 'output window, operand 0, single buffered']
    %8 = vsyncpa [#allocation3], 0
    %9 = vsyncpa [#allocation4], 0
    // Predicated region
    $region2: #{tpu_custom_call.1} parent=1 // pred_check
      _
    $region3: #{tpu_custom_call.1} parent=1 // pred_check_branch
      %11 = sbr.rel (0) target = $region5
    $region4: #{tpu_custom_call.1} parent=1 // pred_region
      %13 = vsyncadd [#allocation3], 0
      %s14 = sshll.u32 %s0, 4
      %s15 = int_to_ptr.hbm [resolvable:$true] %s14
      %s16 = sshll.u32 [#allocation2], 4
      %s17 = int_to_ptr.vmem [resolvable:$true] %s16
      %22 = dma.hbm_to_vmem [thread:$0]  %s15, 256, %s17, [#allocation3], 128, 128, 8
    $region5: #{tpu_custom_call.1} parent=1 // pred_fallthru
      _
    // Predicated region
    $region6: #{tpu_custom_call.1} parent=1 // pred_check
      _
    $region7: #{tpu_custom_call.1} parent=1 // pred_check_branch
      %24 = sbr.rel (0) target = $region9
    $region8: #{tpu_custom_call.1} parent=1 // pred_region
      _
    $region9: #{tpu_custom_call.1} parent=1 // pred_fallthru
      _
    // Predicated region
    $region10: #{tpu_custom_call.1} parent=1 // pred_check
      _
    $region11: #{tpu_custom_call.1} parent=1 // pred_check_branch
      %26 = sbr.rel (0) target = $region13
    $region12: #{tpu_custom_call.1} parent=1 // pred_region
      _
    $region13: #{tpu_custom_call.1} parent=1 // pred_fallthru
      _
    // Predicated region
    $region14: #{tpu_custom_call.1} parent=1 // pred_check
      _
    $region15: #{tpu_custom_call.1} parent=1 // pred_check_branch
      %28 = sbr.rel (0) target = $region17
    $region16: #{tpu_custom_call.1} parent=1 // pred_region
      %30 = dma.done [#allocation3], 256
    $region17: #{tpu_custom_call.1} parent=1 // pred_fallthru
      _
    %v31 = vld [vmem:[%s1] sm:$0xff]
    %v32 = vld [vmem:[#allocation2] sm:$0xff]
    %v33 = vld [vmem:[#allocation2 + $0x8] sm:$0xff]
    %v34 = vld [vmem:[%s2] sm:$0xff]
    %36 = vset.pattern.permute.xlu0 0
    %37 = vperm.xlu0 %36, %v34
    %v38 = vpop.permute.xlu0 %37
    %vm40 = vcmask 130048
    %v42 = vsel %vm40, %v31, 0
    %44 = vmatpush.msra.mxu0 0.0
    %45 = vmatpush.msra.mxu0 0.0
    %46 = vmatpush.msra.mxu0 0.0
    %47 = vmatpush.msra.mxu0 0.0
    %48 = vmatpush.msra.mxu0 0.0
    %49 = vmatpush.msra.mxu0 0.0
    %50 = vmatpush.msra.mxu0 0.0
    %51 = vmatpush.msra.mxu0 0.0
    %52 = vmatpush.msra.mxu0 0.0
    %53 = vmatpush.msra.mxu0 0.0
    %54 = vmatpush.msra.mxu0 0.0
    %55 = vmatpush.msra.mxu0 0.0
    %56 = vmatpush.msra.mxu0 0.0
    %57 = vmatpush.msra.mxu0 0.0
    %58 = vmatpush.msra.mxu0 %v33
    %59 = vmatpush.msra.mxu0 %v32
    %60 = vmatmul.f32.gmra.mxu0 %v42
    %v61 = vpop.f32.mrf.mxu0
    %v62 = vadd.f32 %v38, %v61
    %63 = vdwg.mxu0
    %vm64 = vcmp.ge.f32.partialorder %v62, 0.0
    %v65 = vmul.f32 %v62, 0.1
    %v66 = vsel %vm64, %v62, %v65
    %67 = vst [vmem:[#allocation5] sm:$0xff] %v66
    // Predicated region
    $region18: #{tpu_custom_call.1} parent=1 // pred_check
      _
    $region19: #{tpu_custom_call.1} parent=1 // pred_check_branch
      %69 = sbr.rel (0) target = $region21
    $region20: #{tpu_custom_call.1} parent=1 // pred_region
      %71 = vsyncadd [#allocation4], 0
      %s73 = sshll.u32 [#allocation5], 4
      %s74 = int_to_ptr.vmem [resolvable:$true] %s73
      %s75 = sshll.u32 %s3, 4
      %s76 = int_to_ptr.hbm [resolvable:$true] %s75
      %78 = dma.vmem_to_hbm [thread:$0]  %s74, 128, %s76, [#allocation4]
    $region21: #{tpu_custom_call.1} parent=1 // pred_fallthru
      _
    // Predicated region
    $region22: #{tpu_custom_call.1} parent=1 // pred_check
      _
    $region23: #{tpu_custom_call.1} parent=1 // pred_check_branch
      %80 = sbr.rel (0) target = $region25
    $region24: #{tpu_custom_call.1} parent=1 // pred_region
      %82 = dma.done [#allocation4], 128
    $region25: #{tpu_custom_call.1} parent=1 // pred_fallthru
      _
    %83 = vsyncpa [#allocation3], 1
    %84 = vsyncpa [#allocation4], 1

</llo_original>
